<compile_context>
chip_gen: v7x
topology: tpu7x:2x2x1
jax: 0.10.0
libtpu: 0.0.40
codegen_flags: <defaults>
</compile_context>

<pallas_src>
import math

import jax
import jax.numpy as jnp
from jax.experimental import pallas as pl
from jax.experimental.pallas import tpu as pltpu

# Hoisted Python-float constants: immediate VALU operands, no traced sqrt /
# broadcast_in_dim inside the kernel.
_SQRT_2_OVER_PI = math.sqrt(2.0 / math.pi)
_GELU_COEF = 0.044715

_TARGET_BLOCK_BYTES = 2 << 20   # ~2 MiB/buffer: ~85%+ of HBM roofline, 8 MiB resident
_FLOOR_BLOCK_BYTES = 256 << 10  # never shrink below this while chasing step count
_MIN_GRID_STEPS = 8             # >= ~4 steps per TensorCore on v7x for large inputs
_LANE_WIDTHS = (512, 256, 128)


def _gelu_kernel(x_ref, o_ref):
    # Compute in f32 (v5e's VPU/EUP are f32-only); cast on store.
    x = x_ref[...].astype(jnp.float32)
    inner = _SQRT_2_OVER_PI * (x + _GELU_COEF * x * x * x)
    o_ref[...] = (0.5 * x * (1.0 + jnp.tanh(inner))).astype(o_ref.dtype)


def _choose_layout(n_elems: int, itemsize: int):
    """Pick (lanes, rows, block_rows) for a flat tensor of `n_elems` elements.

    Returns None if n_elems is not a multiple of 128 (caller pads the lane
    remainder only).
    """
    lanes = None
    for w in _LANE_WIDTHS:
        if n_elems % w == 0:
            lanes = w
            break
    if lanes is None:
        return None

    rows = n_elems // lanes
    sublane_mult = max(8, 32 // itemsize)  # 8 for f32, 16 for bf16, 32 for int8/fp8
    row_bytes = lanes * itemsize

    target_rows = max(sublane_mult, _TARGET_BLOCK_BYTES // row_bytes)
    floor_rows = max(sublane_mult, _FLOOR_BLOCK_BYTES // row_bytes)

    # Cap block height so big inputs get >= _MIN_GRID_STEPS pipeline steps,
    # but never drop below the floor (per-step ~600-cycle overhead amortization).
    block_rows = min(target_rows, max(pl.cdiv(rows, _MIN_GRID_STEPS), floor_rows))

    # Round up to the sublane packing multiple (legal block shape).  A partial
    # last grid block is masked by Pallas, so block_rows need not divide rows.
    block_rows = -(-block_rows // sublane_mult) * sublane_mult
    if block_rows >= rows:
        block_rows = rows  # single full-extent block (always a legal shape)
    return lanes, rows, block_rows


def gelu_pallas(x: jax.Array) -> jax.Array:
    """Tanh-approx GELU matching the PyTorch module's forward semantics."""
    orig_shape = x.shape
    dtype = x.dtype
    n = x.size
    itemsize = jnp.dtype(dtype).itemsize

    flat = x.reshape(-1)
    pad = 0
    layout = _choose_layout(n, itemsize)
    if layout is None:
        # TODO(synk): non-multiple-of-128 element counts take a pad + slice
        # path (two extra HBM passes); handle the ragged tail with an
        # in-kernel masked store if such shapes ever matter.
        pad = (-n) % 128
        flat = jnp.pad(flat, (0, pad))  # gelu(0) == 0, zero-padding is safe
        layout = _choose_layout(n + pad, itemsize)
    lanes, rows, block_rows = layout

    x2d = flat.reshape(rows, lanes)
    grid = (pl.cdiv(rows, block_rows),)

    n_total = rows * lanes
    cost = pl.CostEstimate(
        flops=8 * n_total,
        transcendentals=n_total,
        bytes_accessed=2 * n_total * itemsize,
    )

    out2d = pl.pallas_call(
        _gelu_kernel,
        out_shape=jax.ShapeDtypeStruct((rows, lanes), dtype),
        grid_spec=pltpu.PrefetchScalarGridSpec(
            num_scalar_prefetch=0,
            grid=grid,
            in_specs=[pl.BlockSpec((block_rows, lanes), lambda i: (i, 0))],
            out_specs=pl.BlockSpec((block_rows, lanes), lambda i: (i, 0)),
        ),
        compiler_params=pltpu.CompilerParams(
            dimension_semantics=("parallel",),
        ),
        cost_estimate=cost,
    )(x2d)

    out = out2d.reshape(-1)
    if pad:
        out = out[:n]
    return out.reshape(orig_shape)


def gelu_reference(x: jax.Array) -> jax.Array:
    # Pure-JAX reference mirroring the PyTorch forward exactly.
    c = jnp.sqrt(jnp.asarray(2.0 / math.pi, dtype=x.dtype))
    return 0.5 * x * (1.0 + jnp.tanh(c * (x + 0.044715 * jnp.power(x, 3))))


if __name__ == "__main__":
    key = jax.random.PRNGKey(0)
    x = jax.random.normal(key, (2, 4, 16, 16), dtype=jnp.float32)

    y = gelu_pallas(x)
    jax.block_until_ready(y)

    y_ref = gelu_reference(x)
    assert y.shape == x.shape and y.dtype == x.dtype
    # The EUP tanh path can differ from XLA's tanh by > 1e-6 for some inputs;
    # 1e-5 is well inside the tanh-GELU approximation's own error.
    assert jnp.allclose(y, y_ref, atol=1e-5, rtol=1e-5), "mismatch vs reference"

    print("KERNEL_OK")
</pallas_src>

<mosaic_0001>
module attributes {stable_mosaic.version = 11 : i64} {
  func.func @_gelu_kernel(%arg0: i32, %arg1: memref<4x512xf32, #tpu.memory_space<vmem>>, %arg2: memref<4x512xf32, #tpu.memory_space<vmem>>) attributes {dimension_semantics = [#tpu.dimension_semantics<parallel>], iteration_bounds = array<i64: 1>, scalar_prefetch = 0 : i64, scratch_operands = 0 : i64, tpu.core_type = #tpu.core_type<tc>, window_params = [{transform_indices = @transform_0, window_bounds = array<i64: 4, 512>}, {transform_indices = @transform_1, window_bounds = array<i64: 4, 512>}]} {
    %c0 = arith.constant 0 : index
    %c0_0 = arith.constant 0 : index
    %0 = vector.load %arg1[%c0, %c0_0] : memref<4x512xf32, #tpu.memory_space<vmem>>, vector<4x512xf32>
    %cst = arith.constant 4.471500e-02 : f32
    %1 = vector.broadcast %cst : f32 to vector<4x512xf32>
    %2 = arith.mulf %1, %0 : vector<4x512xf32>
    %3 = arith.mulf %2, %0 : vector<4x512xf32>
    %4 = arith.mulf %3, %0 : vector<4x512xf32>
    %5 = arith.addf %0, %4 : vector<4x512xf32>
    %cst_1 = arith.constant 0.797884583 : f32
    %6 = vector.broadcast %cst_1 : f32 to vector<4x512xf32>
    %7 = arith.mulf %6, %5 : vector<4x512xf32>
    %cst_2 = arith.constant 5.000000e-01 : f32
    %8 = vector.broadcast %cst_2 : f32 to vector<4x512xf32>
    %9 = arith.mulf %8, %0 : vector<4x512xf32>
    %10 = math.tanh %7 : vector<4x512xf32>
    %cst_3 = arith.constant 1.000000e+00 : f32
    %11 = vector.broadcast %cst_3 : f32 to vector<4x512xf32>
    %12 = arith.addf %11, %10 : vector<4x512xf32>
    %13 = arith.mulf %9, %12 : vector<4x512xf32>
    %c0_4 = arith.constant 0 : index
    %c0_5 = arith.constant 0 : index
    %14 = vector.load %arg2[%c0_4, %c0_5] : memref<4x512xf32, #tpu.memory_space<vmem>>, vector<4x512xf32>
    tpu.vector_store %arg2[%c0_4, %c0_5], %13 {strides = array<i32>} : memref<4x512xf32, #tpu.memory_space<vmem>>, vector<4x512xf32>,
    return
  }
  func.func @transform_0(%arg0: i32) -> (i32, i32) {
    %c0_i32 = arith.constant 0 : i32
    %c0_i32_0 = arith.constant 0 : i32
    return %arg0, %c0_i32 : i32, i32
  }
  func.func @transform_1(%arg0: i32) -> (i32, i32) {
    %c0_i32 = arith.constant 0 : i32
    %c0_i32_0 = arith.constant 0 : i32
    return %arg0, %c0_i32 : i32, i32
  }
}

</mosaic_0001>

<llo_original>
// kernel: tpu_custom_call.1
$region0: #{tpu_custom_call.1}
  #allocation0 [shape = 'u32[]', space=smem, size = 0x4, offset = 0x4, fixed_abs, tag = 'smem constant byte address 0x4 - core index']
  #allocation1 [shape = 'u32[144,128]{1,0:T(1,128)}', space=vmem, size = 0x12000, scoped, tag = 'internal scratch']
  %s0 = inlined_call_operand.hbm [shape: f32[4,512], index: 0, kind: input, shape index: {}]
  %s1 = inlined_call_operand.hbm [shape: f32[4,512], index: 1, kind: output, shape index: {}]
  %s2 = sld [smem:[#allocation0]]
  $region18: #{tpu_custom_call.1} parent=0
    _
  %s4 = ssub.s32 1, %s2
  %s5 = scalar_select 0, %s4, %s2
  $region1: #{tpu_custom_call.1} parent=0
    #allocation2 [shape = 'u8[8192]{0}', space=vmem, size = 0x2000, scoped, tag = 'input window, operand 0, single buffered']
    #allocation3 [shape = 's32[1]{0}', space=sflag, size = 0x4, scoped, tag = 'scoped memory for tpu_custom_call.1']
    #allocation4 [shape = 's32[1]{0}', space=sflag, size = 0x4, scoped, tag = 'scoped memory for tpu_custom_call.1']
    #allocation5 [shape = 'u8[8192]{0}', space=vmem, size = 0x2000, scoped, tag = 'output window, operand 0, single buffered']
    %6 = vsyncpa [#allocation3], 0
    %7 = vsyncpa [#allocation4], 0
    // Predicated region
    $region2: #{tpu_custom_call.1} parent=1 // pred_check
      _
    $region3: #{tpu_custom_call.1} parent=1 // pred_check_branch
      %9 = sbr.rel (0) target = $region5
    $region4: #{tpu_custom_call.1} parent=1 // pred_region
      %s11 = ssub.s32 256, 256
      %12 = vsyncadd [#allocation3], %s11
      %s14 = sshll.u32 [#allocation2], 4
      %s15 = int_to_ptr.vmem [resolvable:$true] %s14
      %17 = dma.hbm_to_vmem [thread:$0]  %s0, 256, %s15, [#allocation3]
    $region5: #{tpu_custom_call.1} parent=1 // pred_fallthru
      _
    // Predicated region
    $region6: #{tpu_custom_call.1} parent=1 // pred_check
      _
    $region7: #{tpu_custom_call.1} parent=1 // pred_check_branch
      %19 = sbr.rel (0) target = $region9
    $region8: #{tpu_custom_call.1} parent=1 // pred_region
      %20 = dma.done [#allocation3], 256
    $region9: #{tpu_custom_call.1} parent=1 // pred_fallthru
      _
    %v21 = vld [vmem:[#allocation2] sm:$0xff]
    %v22 = vld [vmem:[#allocation2 + $0x8] sm:$0xff]
    %v23 = vmul.f32 %v21, 0.044715
    %v24 = vmul.f32 %v22, 0.044715
    %v25 = vmul.f32 %v23, %v21
    %v26 = vmul.f32 %v24, %v22
    %v27 = vmul.f32 %v25, %v21
    %v28 = vmul.f32 %v26, %v22
    %v29 = vadd.f32 %v21, %v27
    %v30 = vadd.f32 %v22, %v28
    %v31 = vmul.f32 %v29, 0.7978846
    %v32 = vmul.f32 %v30, 0.7978846
    %v33 = vmul.f32 %v21, 0.5
    %v34 = vmul.f32 %v22, 0.5
    %v35 = vtanh.pop %v31
    %v36 = vtanh.pop %v32
    %v37 = vadd.f32 %v35, 1.0
    %v38 = vadd.f32 %v36, 1.0
    %v39 = vmul.f32 %v33, %v37
    %v40 = vmul.f32 %v34, %v38
    %41 = vst [vmem:[#allocation5] sm:$0xff] %v39
    %42 = vst [vmem:[#allocation5 + $0x8] sm:$0xff] %v40
    // Predicated region
    $region10: #{tpu_custom_call.1} parent=1 // pred_check
      _
    $region11: #{tpu_custom_call.1} parent=1 // pred_check_branch
      %44 = sbr.rel (0) target = $region13
    $region12: #{tpu_custom_call.1} parent=1 // pred_region
      %s46 = ssub.s32 256, 256
      %47 = vsyncadd [#allocation4], %s46
      %s49 = sshll.u32 [#allocation5], 4
      %s50 = int_to_ptr.vmem [resolvable:$true] %s49
      %52 = dma.vmem_to_hbm [thread:$0]  %s50, 256, %s1, [#allocation4]
    $region13: #{tpu_custom_call.1} parent=1 // pred_fallthru
      _
    // Predicated region
    $region14: #{tpu_custom_call.1} parent=1 // pred_check
      _
    $region15: #{tpu_custom_call.1} parent=1 // pred_check_branch
      %54 = sbr.rel (0) target = $region17
    $region16: #{tpu_custom_call.1} parent=1 // pred_region
      %55 = dma.done [#allocation4], 256
    $region17: #{tpu_custom_call.1} parent=1 // pred_fallthru
      _
    %56 = vsyncpa [#allocation3], 1
    %57 = vsyncpa [#allocation4], 1

</llo_original>
